<compile_context>
chip_gen: v7x
topology: tpu7x:2x2x1
jax: 0.10.0
libtpu: 0.0.40
codegen_flags: <defaults>
</compile_context>

<pallas_src>
import functools

import jax
import jax.numpy as jnp
from jax.experimental import pallas as pl
from jax.experimental.pallas import tpu as pltpu

LN_EPS = 1e-5  # torch.nn.LayerNorm default


def _round_up(x, m):
    return (x + m - 1) // m * m


def _vmem_limit_bytes():
    """Per-generation scoped-VMEM limit: ~3/4 of physical, capped at 96 MiB
    (v5e/v6e have 128 MiB per core; v7x only 64 MiB per TensorCore)."""
    try:
        phys = int(pltpu.get_tpu_info().vmem_capacity_bytes)
    except Exception:
        phys = 64 * 1024 * 1024  # conservative (v7x-sized) fallback
    return int(min(phys * 3 // 4, 96 * 1024 * 1024))


def _choose_row_tile(B, Ho, Wo, C, N, budget_bytes):
    """Output-row tile Th (must divide Ho).  Prefer the largest Th that still
    yields >= ~8 total grid steps (>= 3-4 per TensorCore on dual-core chips)
    and whose per-step working set fits the VMEM budget."""
    lanes_in = _round_up(2 * C, 128)
    lanes_n = _round_up(N, 128)

    def step_bytes(th):
        rows = _round_up(th * Wo, 8)
        slab = rows * lanes_in * 2          # one bf16 tap slab in flight
        accb = rows * lanes_n * 4           # f32 accumulator / LN temporaries
        outb = rows * lanes_n * 4           # output block (double-buffered)
        return 2 * slab + 3 * accb + 2 * outb

    divisors = [d for d in range(1, Ho + 1) if Ho % d == 0]
    # (Th*Wo) must be a sublane multiple (8) unless the block is the full dim.
    valid = [d for d in divisors if (d * Wo) % 8 == 0 or d == Ho]
    fitting = [d for d in valid if step_bytes(d) <= budget_bytes and d * Wo <= 4096]
    if not fitting:
        fitting = [min(valid)]
    target_steps = 8
    for d in sorted(fitting, reverse=True):
        if B * (Ho // d) >= target_steps:
            return d
    return min(fitting)


def _merge_block_kernel(x_ref, w_ref, b_ref, g_ref, beta_ref, o_ref, *, th, wo, c):
    """One (batch b, row-block r) grid step.

    x_ref    : (1, Ho+1, 2, Wo+1, 2C) bf16 -- full padded image, column pairs
               packed into the lane axis; block index ignores r, so the image
               stays resident in VMEM across the inner row-block axis.
    w_ref    : (3, 2, 2C, N) bf16 -- w_ref[ki, 0] = [w[ki,0]; w[ki,1]],
               w_ref[ki, 1] = [w[ki,2]; 0].
    o_ref    : (1, Th*Wo, N) -- LayerNormed conv output rows [r*Th, (r+1)*Th).
    """
    r = pl.program_id(1)
    row0 = r * th
    n = o_ref.shape[-1]
    rows = th * wo

    # 3x3 / stride-2 conv as 6 accumulated MXU matmuls, f32 accumulation.
    acc = jnp.zeros((rows, n), dtype=jnp.float32)
    for ki in range(3):                      # row taps (unrolled)
        di, pi = ki // 2, ki % 2
        for d in range(2):                   # column-pair slabs (unrolled)
            slab = x_ref[0, pl.ds(row0 + di, th), pi, pl.ds(d, wo), :]
            # (th, wo, 2C) -> (th*wo, 2C); free merge when Wo % 8 == 0.
            acc += jnp.dot(slab.reshape(rows, 2 * c), w_ref[ki, d],
                           preferred_element_type=jnp.float32)

    acc = acc + b_ref[...]                   # conv bias (1, N)

    # Fused LayerNorm over the real channel axis (centered two-pass variance).
    mean = jnp.mean(acc, axis=-1, keepdims=True)
    xc = acc - mean
    var = jnp.mean(xc * xc, axis=-1, keepdims=True)
    y = xc * jax.lax.rsqrt(var + LN_EPS)
    o_ref[0] = (y * g_ref[...] + beta_ref[...]).astype(o_ref.dtype)


def merge_block(x, H, W, w_hwio, bias, gamma, beta):
    """x: (B, H*W, C_in), conv weight in HWIO layout (3, 3, C_in, C_out).
    Returns (out: (B, Ho*Wo, C_out), Ho, Wo) -- matches Merge_Block.forward."""
    B, HW, C = x.shape
    assert HW == H * W
    N = w_hwio.shape[-1]
    Ho, Wo = (H + 1) // 2, (W + 1) // 2

    # Zero-pad (conv pad=1 plus bottom/right fill up to 2*(Ho+1) x 2*(Wo+1)) in
    # bf16 -- the only wrapper HBM pass over the input -- then pack column
    # pairs into the lane axis with a free reshape.
    x_nhwc = x.reshape(B, H, W, C).astype(jnp.bfloat16)
    Hp, Wp = 2 * Ho + 2, 2 * Wo + 2
    xp = jnp.pad(x_nhwc, ((0, 0), (1, Hp - 1 - H), (1, Wp - 1 - W), (0, 0)))
    x_planes = xp.reshape(B, Ho + 1, 2, Wo + 1, 2 * C)

    # Weight: 6 slabs of shape (2C, N): [w(ki,0); w(ki,1)] and [w(ki,2); 0].
    w_b = w_hwio.astype(jnp.bfloat16)
    w01 = w_b[:, 0:2].reshape(3, 1, 2 * C, N)
    w2 = jnp.concatenate([w_b[:, 2], jnp.zeros((3, C, N), jnp.bfloat16)], axis=1)
    wk = jnp.concatenate([w01, w2.reshape(3, 1, 2 * C, N)], axis=1)  # (3,2,2C,N)

    b_v = bias.astype(jnp.float32).reshape(1, N)
    g_v = gamma.astype(jnp.float32).reshape(1, N)
    be_v = beta.astype(jnp.float32).reshape(1, N)

    vmem_limit = _vmem_limit_bytes()
    lanes_in = _round_up(2 * C, 128)
    img_block = (Ho + 1) * 2 * _round_up(Wo + 1, 8) * lanes_in * 2  # bf16/buffer
    budget = max(2 * 1024 * 1024, vmem_limit - 2 * img_block - 4 * 1024 * 1024)
    # TODO(synk): if 2*img_block alone exceeds the VMEM limit (very large
    # H*W*C), switch to a manual-DMA row-block pipeline (memory_space=pl.ANY)
    # instead of keeping the whole image resident.
    Th = _choose_row_tile(B, Ho, Wo, C, N, budget)
    R = Ho // Th

    kernel = functools.partial(_merge_block_kernel, th=Th, wo=Wo, c=C)

    out = pl.pallas_call(
        kernel,
        out_shape=jax.ShapeDtypeStruct((B, Ho * Wo, N), x.dtype),
        grid=(B, R),
        in_specs=[
            # Full padded image; block index ignores r -> resident across the
            # inner row-block axis (DMA'd once per image, not per step).
            pl.BlockSpec((1, Ho + 1, 2, Wo + 1, 2 * C),
                         lambda b, r: (b, 0, 0, 0, 0)),
            pl.BlockSpec((3, 2, 2 * C, N), lambda b, r: (0, 0, 0, 0)),
            pl.BlockSpec((1, N), lambda b, r: (0, 0)),   # conv bias (f32)
            pl.BlockSpec((1, N), lambda b, r: (0, 0)),   # LN gamma (f32)
            pl.BlockSpec((1, N), lambda b, r: (0, 0)),   # LN beta  (f32)
        ],
        out_specs=pl.BlockSpec((1, Th * Wo, N), lambda b, r: (b, r, 0)),
        compiler_params=pltpu.CompilerParams(
            dimension_semantics=("parallel", "arbitrary"),
            vmem_limit_bytes=vmem_limit,
        ),
    )(x_planes, wk, b_v, g_v, be_v)

    return out, Ho, Wo


def _reference(x, H, W, w_hwio, bias, gamma, beta):
    """Pure-JAX reference matching the PyTorch forward semantics (f32)."""
    B, HW, C = x.shape
    x_nhwc = x.reshape(B, H, W, C)
    y = jax.lax.conv_general_dilated(
        x_nhwc, w_hwio, window_strides=(2, 2), padding=((1, 1), (1, 1)),
        dimension_numbers=("NHWC", "HWIO", "NHWC"))
    y = y + bias
    B2, Ho, Wo, N = y.shape
    y = y.reshape(B2, Ho * Wo, N)
    mean = y.mean(-1, keepdims=True)
    var = ((y - mean) ** 2).mean(-1, keepdims=True)
    y = (y - mean) / jnp.sqrt(var + LN_EPS) * gamma + beta
    return y, Ho, Wo


if __name__ == "__main__":
    key = jax.random.PRNGKey(0)
    B, C_in, C_out, H, W = 2, 4, 8, 16, 16

    k_x, k_w, k_b = jax.random.split(key, 3)
    x = jax.random.normal(k_x, (B, H * W, C_in), dtype=jnp.float32)
    # Shapes match nn.Conv2d(dim, dim_out, 3, 2, 1) + nn.LayerNorm(dim_out);
    # conv weight stored HWIO (= PyTorch OIHW transposed).
    fan_in = C_in * 9
    w_hwio = jax.random.uniform(
        k_w, (3, 3, C_in, C_out), dtype=jnp.float32,
        minval=-1.0 / jnp.sqrt(fan_in), maxval=1.0 / jnp.sqrt(fan_in))
    bias = jax.random.uniform(
        k_b, (C_out,), dtype=jnp.float32,
        minval=-1.0 / jnp.sqrt(fan_in), maxval=1.0 / jnp.sqrt(fan_in))
    gamma = jnp.ones((C_out,), dtype=jnp.float32)   # LayerNorm default init
    beta = jnp.zeros((C_out,), dtype=jnp.float32)

    out, Ho, Wo = merge_block(x, H, W, w_hwio, bias, gamma, beta)
    out = jax.block_until_ready(out)

    # Loose check vs. full-f32 reference (kernel feeds the MXU in bf16).
    ref32, Ho_r, Wo_r = _reference(x, H, W, w_hwio, bias, gamma, beta)
    assert out.shape == (B, Ho * Wo, C_out) and (Ho, Wo) == (Ho_r, Wo_r)
    assert jnp.max(jnp.abs(out - ref32)) < 5e-2, "mismatch vs f32 reference"

    # Tight check vs. a reference with the same bf16-rounded inputs.
    x_bf = x.astype(jnp.bfloat16).astype(jnp.float32)
    w_bf = w_hwio.astype(jnp.bfloat16).astype(jnp.float32)
    ref_bf, _, _ = _reference(x_bf, H, W, w_bf, bias, gamma, beta)
    assert jnp.max(jnp.abs(out - ref_bf)) < 2e-3, "mismatch vs bf16-input reference"

    print("KERNEL_OK")
</pallas_src>

<mosaic_0001>
module attributes {stable_mosaic.version = 11 : i64} {
  func.func @_merge_block_kernel(%arg0: i32, %arg1: i32, %arg2: memref<1x9x2x9x8xbf16, #tpu.memory_space<vmem>>, %arg3: memref<3x2x8x8xbf16, #tpu.memory_space<vmem>>, %arg4: memref<1x8xf32, #tpu.memory_space<vmem>>, %arg5: memref<1x8xf32, #tpu.memory_space<vmem>>, %arg6: memref<1x8xf32, #tpu.memory_space<vmem>>, %arg7: memref<1x16x8xf32, #tpu.memory_space<vmem>>) attributes {dimension_semantics = [#tpu.dimension_semantics<parallel>, #tpu.dimension_semantics<arbitrary>], iteration_bounds = array<i64: 2, 4>, scalar_prefetch = 0 : i64, scratch_operands = 0 : i64, tpu.core_type = #tpu.core_type<tc>, window_params = [{transform_indices = @transform_0, window_bounds = array<i64: 1, 9, 2, 9, 8>}, {pipeline_mode = #tpu.pipeline_mode<synchronous>, transform_indices = @transform_1, window_bounds = array<i64: 3, 2, 8, 8>}, {pipeline_mode = #tpu.pipeline_mode<synchronous>, transform_indices = @transform_2, window_bounds = array<i64: 1, 8>}, {pipeline_mode = #tpu.pipeline_mode<synchronous>, transform_indices = @transform_3, window_bounds = array<i64: 1, 8>}, {pipeline_mode = #tpu.pipeline_mode<synchronous>, transform_indices = @transform_4, window_bounds = array<i64: 1, 8>}, {transform_indices = @transform_5, window_bounds = array<i64: 1, 16, 8>}]} {
    %c2_i32 = arith.constant 2 : i32
    %0 = arith.muli %arg1, %c2_i32 : i32
    %cst = arith.constant 0.000000e+00 : f32
    %1 = vector.broadcast %cst : f32 to vector<16x8xf32>
    %c0_i32 = arith.constant 0 : i32
    %2 = arith.addi %0, %c0_i32 : i32
    %c0 = arith.constant 0 : index
    %3 = arith.index_cast %2 : i32 to index
    %c0_0 = arith.constant 0 : index
    %c0_1 = arith.constant 0 : index
    %c0_2 = arith.constant 0 : index
    %4 = vector.load %arg2[%c0, %3, %c0_0, %c0_1, %c0_2] : memref<1x9x2x9x8xbf16, #tpu.memory_space<vmem>>, vector<1x2x1x8x8xbf16>
    %5 = vector.shape_cast %4 : vector<1x2x1x8x8xbf16> to vector<2x8x8xbf16>
    %6 = vector.shape_cast %5 : vector<2x8x8xbf16> to vector<16x8xbf16>
    %c0_3 = arith.constant 0 : index
    %c0_4 = arith.constant 0 : index
    %c0_5 = arith.constant 0 : index
    %c0_6 = arith.constant 0 : index
    %7 = vector.load %arg3[%c0_3, %c0_4, %c0_5, %c0_6] : memref<3x2x8x8xbf16, #tpu.memory_space<vmem>>, vector<1x1x8x8xbf16>
    %8 = vector.shape_cast %7 : vector<1x1x8x8xbf16> to vector<8x8xbf16>
    %cst_7 = arith.constant dense<0.000000e+00> : vector<16x8xf32>
    %9 = tpu.matmul %6, %8, %cst_7 {dimension_numbers = #tpu.dot_dimension_numbers<[1], [0], [0], [1], [0, 0, 1, 1], [], []>} : vector<16x8xbf16>, vector<8x8xbf16>, vector<16x8xf32> -> vector<16x8xf32>
    %10 = arith.addf %1, %9 : vector<16x8xf32>
    %c0_i32_8 = arith.constant 0 : i32
    %11 = arith.addi %0, %c0_i32_8 : i32
    %c0_9 = arith.constant 0 : index
    %12 = arith.index_cast %11 : i32 to index
    %c0_10 = arith.constant 0 : index
    %c1 = arith.constant 1 : index
    %c0_11 = arith.constant 0 : index
    %13 = vector.load %arg2[%c0_9, %12, %c0_10, %c1, %c0_11] : memref<1x9x2x9x8xbf16, #tpu.memory_space<vmem>>, vector<1x2x1x8x8xbf16>
    %14 = vector.shape_cast %13 : vector<1x2x1x8x8xbf16> to vector<2x8x8xbf16>
    %15 = vector.shape_cast %14 : vector<2x8x8xbf16> to vector<16x8xbf16>
    %c0_12 = arith.constant 0 : index
    %c1_13 = arith.constant 1 : index
    %c0_14 = arith.constant 0 : index
    %c0_15 = arith.constant 0 : index
    %16 = vector.load %arg3[%c0_12, %c1_13, %c0_14, %c0_15] : memref<3x2x8x8xbf16, #tpu.memory_space<vmem>>, vector<1x1x8x8xbf16>
    %17 = vector.shape_cast %16 : vector<1x1x8x8xbf16> to vector<8x8xbf16>
    %cst_16 = arith.constant dense<0.000000e+00> : vector<16x8xf32>
    %18 = tpu.matmul %15, %17, %cst_16 {dimension_numbers = #tpu.dot_dimension_numbers<[1], [0], [0], [1], [0, 0, 1, 1], [], []>} : vector<16x8xbf16>, vector<8x8xbf16>, vector<16x8xf32> -> vector<16x8xf32>
    %19 = arith.addf %10, %18 : vector<16x8xf32>
    %c0_i32_17 = arith.constant 0 : i32
    %20 = arith.addi %0, %c0_i32_17 : i32
    %c0_18 = arith.constant 0 : index
    %21 = arith.index_cast %20 : i32 to index
    %c1_19 = arith.constant 1 : index
    %c0_20 = arith.constant 0 : index
    %c0_21 = arith.constant 0 : index
    %22 = vector.load %arg2[%c0_18, %21, %c1_19, %c0_20, %c0_21] : memref<1x9x2x9x8xbf16, #tpu.memory_space<vmem>>, vector<1x2x1x8x8xbf16>
    %23 = vector.shape_cast %22 : vector<1x2x1x8x8xbf16> to vector<2x8x8xbf16>
    %24 = vector.shape_cast %23 : vector<2x8x8xbf16> to vector<16x8xbf16>
    %c1_22 = arith.constant 1 : index
    %c0_23 = arith.constant 0 : index
    %c0_24 = arith.constant 0 : index
    %c0_25 = arith.constant 0 : index
    %25 = vector.load %arg3[%c1_22, %c0_23, %c0_24, %c0_25] : memref<3x2x8x8xbf16, #tpu.memory_space<vmem>>, vector<1x1x8x8xbf16>
    %26 = vector.shape_cast %25 : vector<1x1x8x8xbf16> to vector<8x8xbf16>
    %cst_26 = arith.constant dense<0.000000e+00> : vector<16x8xf32>
    %27 = tpu.matmul %24, %26, %cst_26 {dimension_numbers = #tpu.dot_dimension_numbers<[1], [0], [0], [1], [0, 0, 1, 1], [], []>} : vector<16x8xbf16>, vector<8x8xbf16>, vector<16x8xf32> -> vector<16x8xf32>
    %28 = arith.addf %19, %27 : vector<16x8xf32>
    %c0_i32_27 = arith.constant 0 : i32
    %29 = arith.addi %0, %c0_i32_27 : i32
    %c0_28 = arith.constant 0 : index
    %30 = arith.index_cast %29 : i32 to index
    %c1_29 = arith.constant 1 : index
    %c1_30 = arith.constant 1 : index
    %c0_31 = arith.constant 0 : index
    %31 = vector.load %arg2[%c0_28, %30, %c1_29, %c1_30, %c0_31] : memref<1x9x2x9x8xbf16, #tpu.memory_space<vmem>>, vector<1x2x1x8x8xbf16>
    %32 = vector.shape_cast %31 : vector<1x2x1x8x8xbf16> to vector<2x8x8xbf16>
    %33 = vector.shape_cast %32 : vector<2x8x8xbf16> to vector<16x8xbf16>
    %c1_32 = arith.constant 1 : index
    %c1_33 = arith.constant 1 : index
    %c0_34 = arith.constant 0 : index
    %c0_35 = arith.constant 0 : index
    %34 = vector.load %arg3[%c1_32, %c1_33, %c0_34, %c0_35] : memref<3x2x8x8xbf16, #tpu.memory_space<vmem>>, vector<1x1x8x8xbf16>
    %35 = vector.shape_cast %34 : vector<1x1x8x8xbf16> to vector<8x8xbf16>
    %cst_36 = arith.constant dense<0.000000e+00> : vector<16x8xf32>
    %36 = tpu.matmul %33, %35, %cst_36 {dimension_numbers = #tpu.dot_dimension_numbers<[1], [0], [0], [1], [0, 0, 1, 1], [], []>} : vector<16x8xbf16>, vector<8x8xbf16>, vector<16x8xf32> -> vector<16x8xf32>
    %37 = arith.addf %28, %36 : vector<16x8xf32>
    %c1_i32 = arith.constant 1 : i32
    %38 = arith.addi %0, %c1_i32 : i32
    %c0_37 = arith.constant 0 : index
    %39 = arith.index_cast %38 : i32 to index
    %c0_38 = arith.constant 0 : index
    %c0_39 = arith.constant 0 : index
    %c0_40 = arith.constant 0 : index
    %40 = vector.load %arg2[%c0_37, %39, %c0_38, %c0_39, %c0_40] : memref<1x9x2x9x8xbf16, #tpu.memory_space<vmem>>, vector<1x2x1x8x8xbf16>
    %41 = vector.shape_cast %40 : vector<1x2x1x8x8xbf16> to vector<2x8x8xbf16>
    %42 = vector.shape_cast %41 : vector<2x8x8xbf16> to vector<16x8xbf16>
    %c2 = arith.constant 2 : index
    %c0_41 = arith.constant 0 : index
    %c0_42 = arith.constant 0 : index
    %c0_43 = arith.constant 0 : index
    %43 = vector.load %arg3[%c2, %c0_41, %c0_42, %c0_43] : memref<3x2x8x8xbf16, #tpu.memory_space<vmem>>, vector<1x1x8x8xbf16>
    %44 = vector.shape_cast %43 : vector<1x1x8x8xbf16> to vector<8x8xbf16>
    %cst_44 = arith.constant dense<0.000000e+00> : vector<16x8xf32>
    %45 = tpu.matmul %42, %44, %cst_44 {dimension_numbers = #tpu.dot_dimension_numbers<[1], [0], [0], [1], [0, 0, 1, 1], [], []>} : vector<16x8xbf16>, vector<8x8xbf16>, vector<16x8xf32> -> vector<16x8xf32>
    %46 = arith.addf %37, %45 : vector<16x8xf32>
    %c1_i32_45 = arith.constant 1 : i32
    %47 = arith.addi %0, %c1_i32_45 : i32
    %c0_46 = arith.constant 0 : index
    %48 = arith.index_cast %47 : i32 to index
    %c0_47 = arith.constant 0 : index
    %c1_48 = arith.constant 1 : index
    %c0_49 = arith.constant 0 : index
    %49 = vector.load %arg2[%c0_46, %48, %c0_47, %c1_48, %c0_49] : memref<1x9x2x9x8xbf16, #tpu.memory_space<vmem>>, vector<1x2x1x8x8xbf16>
    %50 = vector.shape_cast %49 : vector<1x2x1x8x8xbf16> to vector<2x8x8xbf16>
    %51 = vector.shape_cast %50 : vector<2x8x8xbf16> to vector<16x8xbf16>
    %c2_50 = arith.constant 2 : index
    %c1_51 = arith.constant 1 : index
    %c0_52 = arith.constant 0 : index
    %c0_53 = arith.constant 0 : index
    %52 = vector.load %arg3[%c2_50, %c1_51, %c0_52, %c0_53] : memref<3x2x8x8xbf16, #tpu.memory_space<vmem>>, vector<1x1x8x8xbf16>
    %53 = vector.shape_cast %52 : vector<1x1x8x8xbf16> to vector<8x8xbf16>
    %cst_54 = arith.constant dense<0.000000e+00> : vector<16x8xf32>
    %54 = tpu.matmul %51, %53, %cst_54 {dimension_numbers = #tpu.dot_dimension_numbers<[1], [0], [0], [1], [0, 0, 1, 1], [], []>} : vector<16x8xbf16>, vector<8x8xbf16>, vector<16x8xf32> -> vector<16x8xf32>
    %55 = arith.addf %46, %54 : vector<16x8xf32>
    %c0_55 = arith.constant 0 : index
    %c0_56 = arith.constant 0 : index
    %56 = vector.load %arg4[%c0_55, %c0_56] : memref<1x8xf32, #tpu.memory_space<vmem>>, vector<1x8xf32>
    %57 = vector.broadcast %56 : vector<1x8xf32> to vector<16x8xf32>
    %58 = arith.addf %55, %57 : vector<16x8xf32>
    %cst_57 = arith.constant dense<0.000000e+00> : vector<16xf32>
    %59 = vector.multi_reduction <add>, %58, %cst_57 [1] : vector<16x8xf32> to vector<16xf32>
    %60 = vector.shape_cast %59 : vector<16xf32> to vector<16x1xf32>
    %cst_58 = arith.constant 8.000000e+00 : f32
    %61 = vector.broadcast %cst_58 : f32 to vector<16x1xf32>
    %62 = arith.divf %60, %61 : vector<16x1xf32>
    %63 = vector.broadcast %62 : vector<16x1xf32> to vector<16x8xf32>
    %64 = arith.subf %58, %63 : vector<16x8xf32>
    %65 = arith.mulf %64, %64 : vector<16x8xf32>
    %cst_59 = arith.constant dense<0.000000e+00> : vector<16xf32>
    %66 = vector.multi_reduction <add>, %65, %cst_59 [1] : vector<16x8xf32> to vector<16xf32>
    %67 = vector.shape_cast %66 : vector<16xf32> to vector<16x1xf32>
    %cst_60 = arith.constant 8.000000e+00 : f32
    %68 = vector.broadcast %cst_60 : f32 to vector<16x1xf32>
    %69 = arith.divf %67, %68 : vector<16x1xf32>
    %cst_61 = arith.constant 9.99999974E-6 : f32
    %70 = vector.broadcast %cst_61 : f32 to vector<16x1xf32>
    %71 = arith.addf %69, %70 : vector<16x1xf32>
    %72 = math.rsqrt %71 : vector<16x1xf32>
    %73 = vector.broadcast %72 : vector<16x1xf32> to vector<16x8xf32>
    %74 = arith.mulf %64, %73 : vector<16x8xf32>
    %c0_62 = arith.constant 0 : index
    %c0_63 = arith.constant 0 : index
    %75 = vector.load %arg5[%c0_62, %c0_63] : memref<1x8xf32, #tpu.memory_space<vmem>>, vector<1x8xf32>
    %76 = vector.broadcast %75 : vector<1x8xf32> to vector<16x8xf32>
    %77 = arith.mulf %74, %76 : vector<16x8xf32>
    %c0_64 = arith.constant 0 : index
    %c0_65 = arith.constant 0 : index
    %78 = vector.load %arg6[%c0_64, %c0_65] : memref<1x8xf32, #tpu.memory_space<vmem>>, vector<1x8xf32>
    %79 = vector.broadcast %78 : vector<1x8xf32> to vector<16x8xf32>
    %80 = arith.addf %77, %79 : vector<16x8xf32>
    %c0_66 = arith.constant 0 : index
    %c0_67 = arith.constant 0 : index
    %c0_68 = arith.constant 0 : index
    %81 = vector.load %arg7[%c0_66, %c0_67, %c0_68] : memref<1x16x8xf32, #tpu.memory_space<vmem>>, vector<1x16x8xf32>
    %82 = vector.shape_cast %81 : vector<1x16x8xf32> to vector<16x8xf32>
    %83 = vector.shape_cast %80 : vector<16x8xf32> to vector<1x16x8xf32>
    tpu.vector_store %arg7[%c0_66, %c0_67, %c0_68], %83 {strides = array<i32>} : memref<1x16x8xf32, #tpu.memory_space<vmem>>, vector<1x16x8xf32>,
    return
  }
  func.func @transform_0(%arg0: i32, %arg1: i32) -> (i32, i32, i32, i32, i32) {
    %c0_i32 = arith.constant 0 : i32
    %c0_i32_0 = arith.constant 0 : i32
    %c0_i32_1 = arith.constant 0 : i32
    %c0_i32_2 = arith.constant 0 : i32
    %c0_i32_3 = arith.constant 0 : i32
    return %arg0, %c0_i32, %c0_i32_0, %c0_i32_1, %c0_i32_2 : i32, i32, i32, i32, i32
  }
  func.func @transform_1(%arg0: i32, %arg1: i32) -> (i32, i32, i32, i32) {
    %c0_i32 = arith.constant 0 : i32
    %c0_i32_0 = arith.constant 0 : i32
    %c0_i32_1 = arith.constant 0 : i32
    %c0_i32_2 = arith.constant 0 : i32
    %c0_i32_3 = arith.constant 0 : i32
    return %c0_i32, %c0_i32_0, %c0_i32_1, %c0_i32_2 : i32, i32, i32, i32
  }
  func.func @transform_2(%arg0: i32, %arg1: i32) -> (i32, i32) {
    %c0_i32 = arith.constant 0 : i32
    %c0_i32_0 = arith.constant 0 : i32
    %c0_i32_1 = arith.constant 0 : i32
    return %c0_i32, %c0_i32_0 : i32, i32
  }
  func.func @transform_3(%arg0: i32, %arg1: i32) -> (i32, i32) {
    %c0_i32 = arith.constant 0 : i32
    %c0_i32_0 = arith.constant 0 : i32
    %c0_i32_1 = arith.constant 0 : i32
    return %c0_i32, %c0_i32_0 : i32, i32
  }
  func.func @transform_4(%arg0: i32, %arg1: i32) -> (i32, i32) {
    %c0_i32 = arith.constant 0 : i32
    %c0_i32_0 = arith.constant 0 : i32
    %c0_i32_1 = arith.constant 0 : i32
    return %c0_i32, %c0_i32_0 : i32, i32
  }
  func.func @transform_5(%arg0: i32, %arg1: i32) -> (i32, i32, i32) {
    %c0_i32 = arith.constant 0 : i32
    %c0_i32_0 = arith.constant 0 : i32
    return %arg0, %arg1, %c0_i32 : i32, i32, i32
  }
}

</mosaic_0001>

<llo_original>
// kernel: tpu_custom_call.1
$region0: #{tpu_custom_call.1}
  #allocation0 [shape = 'u32[]', space=smem, size = 0x4, offset = 0x4, fixed_abs, tag = 'smem constant byte address 0x4 - core index']
  #allocation1 [shape = 'u32[144,128]{1,0:T(1,128)}', space=vmem, size = 0x12000, scoped, tag = 'internal scratch']
  %s0 = inlined_call_operand.vmem [shape: bf16[2,9,2,9,8], index: 0, kind: input, shape index: {}]
  %s1 = inlined_call_operand.vmem [shape: bf16[3,2,8,8], index: 1, kind: input, shape index: {}]
  %s2 = inlined_call_operand.vmem [shape: f32[1,8], index: 2, kind: input, shape index: {}]
  %s3 = inlined_call_operand.vmem [shape: f32[1,8], index: 3, kind: input, shape index: {}]
  %s4 = inlined_call_operand.vmem [shape: f32[1,8], index: 4, kind: input, shape index: {}]
  %s5 = inlined_call_operand.vmem [shape: f32[2,64,8], index: 5, kind: output, shape index: {}]
  %s6 = sld [smem:[#allocation0]]
  $region53: #{tpu_custom_call.1} parent=0
    _
  %s8 = ssub.s32 1, %s6
  %s9 = scalar_select 0, %s8, %s6
  loop: start=0, step=1, limit=10
  $region2: #{tpu_custom_call.1} parent=0 // loop_pre_header
    _
  $region3: #{tpu_custom_call.1} parent=0 // loop_header
    %s11 = sphi 0, %s15
    %p12 = scmp.ge.s32.totalorder %s11, 10
    %s18 = sphi 0, %s30
    %s19 = sphi 0, %s26
    %s20 = sphi 0, %s18
    %s21 = sphi 0, %s19
    %s22 = sphi 0, %s20
    %s23 = sphi 0, %s21
    %s33 = sphi 0, %s35
    %s36 = sphi 0, %s33
    %s37 = sphi 0, %s36
    %s53 = sphi 0, %s37
    %s57 = sphi 0, %s57
    %s59 = sphi 0, %s57
    %s60 = sphi 0, %s59
    %s74 = sphi 0, %s60
    %s78 = sphi 0, %s78
    %s80 = sphi 0, %s78
    %s81 = sphi 0, %s80
    %s95 = sphi 0, %s81
    %s99 = sphi 0, %s99
    %s101 = sphi 0, %s99
    %s102 = sphi 0, %s101
    %s116 = sphi 0, %s102
    %s120 = sphi 0, %s120
    %s122 = sphi 0, %s120
    %s123 = sphi 0, %s122
    %s137 = sphi 0, %s123
    %s145 = sphi 0, %s147
    %s148 = sphi 0, %s145
    %s149 = sphi 0, %s148
    %s165 = sphi 0, %s149
  $region4: #{tpu_custom_call.1} parent=0 // loop_header_branch
    %14 = sbr.rel (%p12) target = $region8
  $region5: #{tpu_custom_call.1} parent=0 // loop_body
    %s16 = ssub.s32 %s11, 1
    %s17 = ssub.s32 %s11, 2
    %s24 = sadd.s32 1, %s19
    %p25 = scmp.ge.s32.totalorder %s24, 4
    %s26 = scalar_select %p25, 0, %s24
    %s27 = sadd.s32 1, %s18
    %s28 = scalar_select %p25, %s27, %s18
    %p29 = scmp.ge.s32.totalorder %s28, 2
    %s30 = scalar_select %p29, 0, %s28
    %s31 = ssub.s32 %s18, %s30
    %p32 = scmp.eq.s32.totalorder %s31, 0
    %s34 = sadd.s32 %s33, 1
    %s35 = scalar_select %p32, %s33, %s34
    %p38 = pneg %p32
    %p39 = scmp.eq.s32.totalorder %s11, 7
    %p40 = por %p38, %p39
    %p41 = scmp.ne.s32.totalorder %s33, %s36
    %p42 = scmp.eq.s32.totalorder %s11, 0
    %p43 = por %p41, %p42
    %p44 = scmp.ne.s32.totalorder %s33, %s36
    %p45 = scmp.eq.s32.totalorder %s16, 7
    %p46 = por %p44, %p45
    %p47 = scmp.ne.s32.totalorder %s36, %s37
    %p48 = scmp.eq.s32.totalorder %s16, 0
    %p49 = por %p47, %p48
    %p50 = scmp.ne.s32.totalorder %s36, %s37
    %p51 = scmp.eq.s32.totalorder %s17, 7
    %p52 = por %p50, %p51
    %p54 = scmp.ne.s32.totalorder %s37, %s53
    %p55 = scmp.eq.s32.totalorder %s17, 0
    %p56 = por %p54, %p55
    %s58 = sadd.s32 %s57, 1
    %p61 = scmp.eq.s32.totalorder %s11, 7
    %p62 = scmp.ne.s32.totalorder %s57, %s59
    %p63 = scmp.eq.s32.totalorder %s11, 0
    %p64 = por %p62, %p63
    %p65 = scmp.ne.s32.totalorder %s57, %s59
    %p66 = scmp.eq.s32.totalorder %s16, 7
    %p67 = por %p65, %p66
    %p68 = scmp.ne.s32.totalorder %s59, %s60
    %p69 = scmp.eq.s32.totalorder %s16, 0
    %p70 = por %p68, %p69
    %p71 = scmp.ne.s32.totalorder %s59, %s60
    %p72 = scmp.eq.s32.totalorder %s17, 7
    %p73 = por %p71, %p72
    %p75 = scmp.ne.s32.totalorder %s60, %s74
    %p76 = scmp.eq.s32.totalorder %s17, 0
    %p77 = por %p75, %p76
    %s79 = sadd.s32 %s78, 1
    %p82 = scmp.eq.s32.totalorder %s11, 7
    %p83 = scmp.ne.s32.totalorder %s78, %s80
    %p84 = scmp.eq.s32.totalorder %s11, 0
    %p85 = por %p83, %p84
    %p86 = scmp.ne.s32.totalorder %s78, %s80
    %p87 = scmp.eq.s32.totalorder %s16, 7
    %p88 = por %p86, %p87
    %p89 = scmp.ne.s32.totalorder %s80, %s81
    %p90 = scmp.eq.s32.totalorder %s16, 0
    %p91 = por %p89, %p90
    %p92 = scmp.ne.s32.totalorder %s80, %s81
    %p93 = scmp.eq.s32.totalorder %s17, 7
    %p94 = por %p92, %p93
    %p96 = scmp.ne.s32.totalorder %s81, %s95
    %p97 = scmp.eq.s32.totalorder %s17, 0
    %p98 = por %p96, %p97
    %s100 = sadd.s32 %s99, 1
    %p103 = scmp.eq.s32.totalorder %s11, 7
    %p104 = scmp.ne.s32.totalorder %s99, %s101
    %p105 = scmp.eq.s32.totalorder %s11, 0
    %p106 = por %p104, %p105
    %p107 = scmp.ne.s32.totalorder %s99, %s101
    %p108 = scmp.eq.s32.totalorder %s16, 7
    %p109 = por %p107, %p108
    %p110 = scmp.ne.s32.totalorder %s101, %s102
    %p111 = scmp.eq.s32.totalorder %s16, 0
    %p112 = por %p110, %p111
    %p113 = scmp.ne.s32.totalorder %s101, %s102
    %p114 = scmp.eq.s32.totalorder %s17, 7
    %p115 = por %p113, %p114
    %p117 = scmp.ne.s32.totalorder %s102, %s116
    %p118 = scmp.eq.s32.totalorder %s17, 0
    %p119 = por %p117, %p118
    %s121 = sadd.s32 %s120, 1
    %p124 = scmp.eq.s32.totalorder %s11, 7
    %p125 = scmp.ne.s32.totalorder %s120, %s122
    %p126 = scmp.eq.s32.totalorder %s11, 0
    %p127 = por %p125, %p126
    %p128 = scmp.ne.s32.totalorder %s120, %s122
    %p129 = scmp.eq.s32.totalorder %s16, 7
    %p130 = por %p128, %p129
    %p131 = scmp.ne.s32.totalorder %s122, %s123
    %p132 = scmp.eq.s32.totalorder %s16, 0
    %p133 = por %p131, %p132
    %p134 = scmp.ne.s32.totalorder %s122, %s123
    %p135 = scmp.eq.s32.totalorder %s17, 7
    %p136 = por %p134, %p135
    %p138 = scmp.ne.s32.totalorder %s123, %s137
    %p139 = scmp.eq.s32.totalorder %s17, 0
    %p140 = por %p138, %p139
    %s141 = ssub.s32 %s18, %s30
    %s142 = ssub.s32 %s19, %s26
    %s143 = sor.u32 %s141, %s142
    %p144 = scmp.eq.s32.totalorder %s143, 0
    %s146 = sadd.s32 %s145, 1
    %s147 = scalar_select %p144, %s145, %s146
    %p150 = pneg %p144
    %p151 = scmp.eq.s32.totalorder %s11, 7
    %p152 = por %p150, %p151
    %p153 = scmp.ne.s32.totalorder %s145, %s148
    %p154 = scmp.eq.s32.totalorder %s11, 0
    %p155 = por %p153, %p154
    %p156 = scmp.ne.s32.totalorder %s145, %s148
    %p157 = scmp.eq.s32.totalorder %s16, 7
    %p158 = por %p156, %p157
    %p159 = scmp.ne.s32.totalorder %s148, %s149
    %p160 = scmp.eq.s32.totalorder %s16, 0
    %p161 = por %p159, %p160
    %p162 = scmp.ne.s32.totalorder %s148, %s149
    %p163 = scmp.eq.s32.totalorder %s17, 7
    %p164 = por %p162, %p163
    %p166 = scmp.ne.s32.totalorder %s149, %s165
    %p167 = scmp.eq.s32.totalorder %s17, 0
    %p168 = por %p166, %p167
    %p169 = scmp.le.s32.totalorder 1, %s11
    %p170 = scmp.lt.s32.totalorder %s11, 9
    %p171 = pnand %p169, %p170
    %p172 = pneg %p171
    // Predicated region
    $region9: #{tpu_custom_call.1} parent=5 // pred_check
      _
    $region10: #{tpu_custom_call.1} parent=5 // pred_check_branch
      %174 = sbr.rel (%p171) target = $region12
    $region11: #{tpu_custom_call.1} parent=5 // pred_region
      %s175 = ssub.s32 %s11, 1
      // Predicated region
      $region13: #{tpu_custom_call.1} parent=11 // pred_check
        %p176 = pneg %p70
      $region14: #{tpu_custom_call.1} parent=11 // pred_check_branch
        %178 = sbr.rel (%p176) target = $region16
      $region15: #{tpu_custom_call.1} parent=11 // pred_region
        _
      $region16: #{tpu_custom_call.1} parent=11 // pred_fallthru
        _
      // Predicated region
      $region17: #{tpu_custom_call.1} parent=11 // pred_check
        %p179 = pneg %p91
      $region18: #{tpu_custom_call.1} parent=11 // pred_check_branch
        %181 = sbr.rel (%p179) target = $region20
      $region19: #{tpu_custom_call.1} parent=11 // pred_region
        _
      $region20: #{tpu_custom_call.1} parent=11 // pred_fallthru
        _
      // Predicated region
      $region21: #{tpu_custom_call.1} parent=11 // pred_check
        %p182 = pneg %p112
      $region22: #{tpu_custom_call.1} parent=11 // pred_check_branch
        %184 = sbr.rel (%p182) target = $region24
      $region23: #{tpu_custom_call.1} parent=11 // pred_region
        _
      $region24: #{tpu_custom_call.1} parent=11 // pred_fallthru
        _
      // Predicated region
      $region25: #{tpu_custom_call.1} parent=11 // pred_check
        %p185 = pneg %p133
      $region26: #{tpu_custom_call.1} parent=11 // pred_check_branch
        %187 = sbr.rel (%p185) target = $region28
      $region27: #{tpu_custom_call.1} parent=11 // pred_region
        _
      $region28: #{tpu_custom_call.1} parent=11 // pred_fallthru
        _
    $region12: #{tpu_custom_call.1} parent=5 // pred_fallthru
      _
    %p188 = scmp.lt.s32.totalorder %s11, 8
    // Predicated region
    $region29: #{tpu_custom_call.1} parent=5 // pred_check
      %p189 = pneg %p188
    $region30: #{tpu_custom_call.1} parent=5 // pred_check_branch
      %191 = sbr.rel (%p189) target = $region32
    $region31: #{tpu_custom_call.1} parent=5 // pred_region
      // Predicated region
      $region33: #{tpu_custom_call.1} parent=31 // pred_check
        %p192 = pneg %p43
      $region34: #{tpu_custom_call.1} parent=31 // pred_check_branch
        %194 = sbr.rel (%p192) target = $region36
      $region35: #{tpu_custom_call.1} parent=31 // pred_region
        %p195 = scmp.lt.s32.totalorder %s18, 1
        %s196 = scalar_select %p195, %s18, 1
        %s197 = smul.addr %s196, 36
        %s198 = smul.addr %s197, 4
        %s199 = scalar_lea.vmem %s0, %s198
      $region36: #{tpu_custom_call.1} parent=31 // pred_fallthru
        _
    $region32: #{tpu_custom_call.1} parent=5 // pred_fallthru
      _
    %p200 = scmp.le.s32.totalorder 1, %s11
    %p201 = scmp.lt.s32.totalorder %s11, 9
    %p202 = pnand %p200, %p201
    %p203 = pneg %p202
    // Predicated region
    $region37: #{tpu_custom_call.1} parent=5 // pred_check
      _
    $region38: #{tpu_custom_call.1} parent=5 // pred_check_branch
      %205 = sbr.rel (%p202) target = $region40
    $region39: #{tpu_custom_call.1} parent=5 // pred_region
      %s206 = ssub.s32 %s11, 1
      %p207 = scmp.lt.s32.totalorder %s20, 1
      %s208 = scalar_select %p207, %s20, 1
      %s209 = smul.addr %s208, 36
      %s210 = smul.addr %s209, 4
      %s211 = scalar_lea.vmem %s0, %s210
      %p212 = pneg %p49
      %p213 = pneg %p46
      %p214 = pneg %p70
      %p215 = pneg %p67
      %p216 = pneg %p91
      %p217 = pneg %p88
      %p218 = pneg %p112
      %p219 = pneg %p109
      %p220 = pneg %p133
      %p221 = pneg %p130
      %p222 = pneg %p161
      %p223 = pneg %p158
      %s224 = smul.u32 2, %s21
      %p225 = scmp.lt.s32.totalorder %s20, 1
      %s226 = scalar_select %p225, %s20, 1
      %p227 = scmp.lt.s32.totalorder %s224, 7
      %s228 = scalar_select %p227, %s224, 7
      %s229 = smul.addr %s226, 8
      %s230 = sadd.s32 %s228, %s229
      %s231 = smul.addr %s230, 8
      %s232 = scalar_lea.vmem %s5, %s231
      %p233 = scmp.lt.s32.totalorder %s20, 1
      %s234 = scalar_select %p233, %s20, 1
      %s235 = smul.addr %s234, 36
      %s236 = smul.addr %s235, 4
      %s237 = scalar_lea.vmem %s0, %s236
      %s238 = smul.u32 2, %s21
      %p239 = scmp.lt.s32.totalorder %s20, 1
      %s240 = scalar_select %p239, %s20, 1
      %p241 = scmp.lt.s32.totalorder %s238, 7
      %s242 = scalar_select %p241, %s238, 7
      %s243 = smul.addr %s240, 8
      %s244 = sadd.s32 %s242, %s243
      %s245 = smul.addr %s244, 8
      %s246 = scalar_lea.vmem %s5, %s245
      %s247 = smul.u32 2, %s21
      %s249 = smul.u32 %s21, 2
      %s250 = smul.u32 %s249, 4
      %s251 = smul.addr %s250, 4
      %s252 = scalar_lea.vmem %s237, %s251
      %v253 = vld [vmem:[%s252] sm:$0xf]
      %v254 = vld [vmem:[%s252 + $0x10] sm:$0xf]
      %v255 = vld [vmem:[%s1] sm:$0xf]
      %v256 = vld [vmem:[%s252 + $0x4] sm:$0x1]
      %v257 = vld [vmem:[%s252 + $0x14] sm:$0x1]
      %vm258 = vsmask.f32 3328
      %vm259 = vsmask.f32 7440
      %vm260 = vmor %vm258, %vm259
      %v262 = vshrl.u32 %v253, 16
      %v264 = vrot.slane %v262, 4
      %v265 = vshll.u32 %v253, 16
      %v267 = vrot.slane %v265, 5
      %v268 = vor.u32 %v264, %v267
      %v269 = vrot.slane %v268, 4
      %v271 = vshll.u32 %v256, 16
      %v273 = vrot.slane %v271, 5
      %v274 = vsel %vm260, %v269, %v273
      %v276 = vshrl.u32 %v254, 16
      %v278 = vrot.slane %v276, 4
      %v279 = vshll.u32 %v254, 16
      %v281 = vrot.slane %v279, 5
      %v282 = vor.u32 %v278, %v281
      %v283 = vrot.slane %v282, 4
      %v285 = vshll.u32 %v257, 16
      %v287 = vrot.slane %v285, 5
      %v288 = vsel %vm260, %v283, %v287
      %s289 = scalar_lea.vmem %s1, 4
      %v290 = vld [vmem:[%s289] sm:$0xf]
      %v291 = vunpack.c.l.b16 %v274
      %v292 = vunpack.c.l.b16 %v288
      %v293 = vpack.c.b16 %v292, %v291
      %vm294 = vcmask 64512
      %v296 = vsel %vm294, %v293, 0
      %vm298 = vcmask 1043456
      %v300 = vsel %vm298, %v290, 0
      %302 = vmatprep.subr.bf16.mxu0 0
      %303 = vmatpush1.bf16.msra.mxu0 %v300
      %304 = vmatprep.subr.bf16.mxu0 0
      %305 = vmatpush1.bf16.msra.mxu0 0
      %306 = vmatprep.subr.bf16.mxu0 0
      %307 = vmatpush1.bf16.msra.mxu0 0
      %308 = vmatprep.subr.bf16.mxu0 0
      %309 = vmatpush1.bf16.msra.mxu0 0
      %310 = vmatprep.subr.bf16.mxu0 0
      %311 = vmatpush1.bf16.msra.mxu0 0
      %312 = vmatprep.subr.bf16.mxu0 0
      %313 = vmatpush1.bf16.msra.mxu0 0
      %314 = vmatprep.subr.bf16.mxu0 0
      %315 = vmatpush1.bf16.msra.mxu0 0
      %316 = vmatprep.subr.bf16.mxu0 0
      %317 = vmatpush1.bf16.msra.mxu0 0
      %318 = vmatprep.subr.bf16.mxu0 0
      %319 = vmatpush1.bf16.msra.mxu0 0
      %320 = vmatprep.subr.bf16.mxu0 0
      %321 = vmatpush1.bf16.msra.mxu0 0
      %322 = vmatprep.subr.bf16.mxu0 0
      %323 = vmatpush1.bf16.msra.mxu0 0
      %324 = vmatprep.subr.bf16.mxu0 0
      %325 = vmatpush1.bf16.msra.mxu0 0
      %326 = vmatprep.subr.bf16.mxu0 0
      %327 = vmatpush1.bf16.msra.mxu0 0
      %328 = vmatprep.subr.bf16.mxu0 0
      %329 = vmatpush1.bf16.msra.mxu0 0
      %330 = vmatprep.subr.bf16.mxu0 0
      %331 = vmatpush1.bf16.msra.mxu0 0
      %332 = vmatprep.subr.bf16.mxu0 0
      %333 = vmatpush1.bf16.msra.mxu0 0
      %334 = vmatprep.mubr.bf16.mxu0 0
      %335 = vmatmul.mubr.bf16.gmra.mrb[0].mxu0 %v296
      %v336 = vpop.f32.mrb[0].mxu0
      %v337 = vadd.f32 0.0, %v336
      %v338 = vpop.f32.mrb[0].mxu0
      %v339 = vpop.f32.mrb[0].mxu0
      %v340 = vadd.f32 0.0, %v339
      %v341 = vpop.f32.mrb[0].mxu0
      %342 = vdwg.mxu0
      %v345 = vunpack.c.l.b16 %v253
      %v346 = vunpack.c.l.b16 %v254
      %v347 = vpack.c.b16 %v346, %v345
      %v349 = vsel %vm294, %v347, 0
      %v352 = vsel %vm298, %v255, 0
      %354 = vmatprep.subr.bf16.mxu0 0
      %355 = vmatpush1.bf16.msra.mxu0 %v352
      %356 = vmatprep.subr.bf16.mxu0 0
      %357 = vmatpush1.bf16.msra.mxu0 0
      %358 = vmatprep.subr.bf16.mxu0 0
      %359 = vmatpush1.bf16.msra.mxu0 0
      %360 = vmatprep.subr.bf16.mxu0 0
      %361 = vmatpush1.bf16.msra.mxu0 0
      %362 = vmatprep.subr.bf16.mxu0 0
      %363 = vmatpush1.bf16.msra.mxu0 0
      %364 = vmatprep.subr.bf16.mxu0 0
      %365 = vmatpush1.bf16.msra.mxu0 0
      %366 = vmatprep.subr.bf16.mxu0 0
      %367 = vmatpush1.bf16.msra.mxu0 0
      %368 = vmatprep.subr.bf16.mxu0 0
      %369 = vmatpush1.bf16.msra.mxu0 0
      %370 = vmatprep.subr.bf16.mxu0 0
      %371 = vmatpush1.bf16.msra.mxu0 0
      %372 = vmatprep.subr.bf16.mxu0 0
      %373 = vmatpush1.bf16.msra.mxu0 0
      %374 = vmatprep.subr.bf16.mxu0 0
      %375 = vmatpush1.bf16.msra.mxu0 0
      %376 = vmatprep.subr.bf16.mxu0 0
      %377 = vmatpush1.bf16.msra.mxu0 0
      %378 = vmatprep.subr.bf16.mxu0 0
      %379 = vmatpush1.bf16.msra.mxu0 0
      %380 = vmatprep.subr.bf16.mxu0 0
      %381 = vmatpush1.bf16.msra.mxu0 0
      %382 = vmatprep.subr.bf16.mxu0 0
      %383 = vmatpush1.bf16.msra.mxu0 0
      %384 = vmatprep.subr.bf16.mxu0 0
      %385 = vmatpush1.bf16.msra.mxu0 0
      %386 = vmatprep.mubr.bf16.mxu0 0
      %387 = vmatmul.mubr.bf16.gmra.mrb[0].mxu0 %v349
      %v388 = vpop.f32.mrb[0].mxu0
      %v389 = vadd.f32 %v337, %v388
      %v390 = vpop.f32.mrb[0].mxu0
      %v391 = vpop.f32.mrb[0].mxu0
      %v392 = vadd.f32 %v340, %v391
      %v393 = vpop.f32.mrb[0].mxu0
      %394 = vdwg.mxu0
      %s395 = sadd.s32 2, %s250
      %s396 = smul.addr %s395, 4
      %s397 = scalar_lea.vmem %s237, %s396
      %v398 = vld [vmem:[%s397] sm:$0xf]
      %v399 = vld [vmem:[%s397 + $0x10] sm:$0xf]
      %s400 = scalar_lea.vmem %s1, 8
      %v401 = vld [vmem:[%s400] sm:$0xf]
      %v404 = vunpack.c.l.b16 %v398
      %v405 = vunpack.c.l.b16 %v399
      %v406 = vpack.c.b16 %v405, %v404
      %v408 = vsel %vm294, %v406, 0
      %v411 = vsel %vm298, %v401, 0
      %413 = vmatprep.subr.bf16.mxu0 0
      %414 = vmatpush1.bf16.msra.mxu0 %v411
      %415 = vmatprep.subr.bf16.mxu0 0
      %416 = vmatpush1.bf16.msra.mxu0 0
      %417 = vmatprep.subr.bf16.mxu0 0
      %418 = vmatpush1.bf16.msra.mxu0 0
      %419 = vmatprep.subr.bf16.mxu0 0
      %420 = vmatpush1.bf16.msra.mxu0 0
      %421 = vmatprep.subr.bf16.mxu0 0
      %422 = vmatpush1.bf16.msra.mxu0 0
      %423 = vmatprep.subr.bf16.mxu0 0
      %424 = vmatpush1.bf16.msra.mxu0 0
      %425 = vmatprep.subr.bf16.mxu0 0
      %426 = vmatpush1.bf16.msra.mxu0 0
      %427 = vmatprep.subr.bf16.mxu0 0
      %428 = vmatpush1.bf16.msra.mxu0 0
      %429 = vmatprep.subr.bf16.mxu0 0
      %430 = vmatpush1.bf16.msra.mxu0 0
      %431 = vmatprep.subr.bf16.mxu0 0
      %432 = vmatpush1.bf16.msra.mxu0 0
      %433 = vmatprep.subr.bf16.mxu0 0
      %434 = vmatpush1.bf16.msra.mxu0 0
      %435 = vmatprep.subr.bf16.mxu0 0
      %436 = vmatpush1.bf16.msra.mxu0 0
      %437 = vmatprep.subr.bf16.mxu0 0
      %438 = vmatpush1.bf16.msra.mxu0 0
      %439 = vmatprep.subr.bf16.mxu0 0
      %440 = vmatpush1.bf16.msra.mxu0 0
      %441 = vmatprep.subr.bf16.mxu0 0
      %442 = vmatpush1.bf16.msra.mxu0 0
      %443 = vmatprep.subr.bf16.mxu0 0
      %444 = vmatpush1.bf16.msra.mxu0 0
      %445 = vmatprep.mubr.bf16.mxu0 0
      %446 = vmatmul.mubr.bf16.gmra.mrb[0].mxu0 %v408
      %v447 = vpop.f32.mrb[0].mxu0
      %v448 = vadd.f32 0.0, %v447
      %v449 = vpop.f32.mrb[0].mxu0
      %v450 = vpop.f32.mrb[0].mxu0
      %v451 = vadd.f32 0.0, %v450
      %v452 = vpop.f32.mrb[0].mxu0
      %453 = vdwg.mxu0
      %v454 = vadd.f32 %v389, %v448
      %v455 = vadd.f32 %v392, %v451
      %v456 = vld [vmem:[%s397] sm:$0xf]
      %v457 = vld [vmem:[%s397 + $0x4] sm:$0x1]
      %v458 = vld [vmem:[%s397 + $0x10] sm:$0xf]
      %v459 = vld [vmem:[%s397 + $0x14] sm:$0x1]
      %v461 = vshrl.u32 %v456, 16
      %v463 = vrot.slane %v461, 4
      %v464 = vshll.u32 %v456, 16
      %v466 = vrot.slane %v464, 5
      %v467 = vor.u32 %v463, %v466
      %v468 = vrot.slane %v467, 4
      %v470 = vshll.u32 %v457, 16
      %v472 = vrot.slane %v470, 5
      %v473 = vsel %vm260, %v468, %v472
      %v475 = vshrl.u32 %v458, 16
      %v477 = vrot.slane %v475, 4
      %v478 = vshll.u32 %v458, 16
      %v480 = vrot.slane %v478, 5
      %v481 = vor.u32 %v477, %v480
      %v482 = vrot.slane %v481, 4
      %v484 = vshll.u32 %v459, 16
      %v486 = vrot.slane %v484, 5
      %v487 = vsel %vm260, %v482, %v486
      %s488 = scalar_lea.vmem %s1, 12
      %v489 = vld [vmem:[%s488] sm:$0xf]
      %v490 = vunpack.c.l.b16 %v473
      %v491 = vunpack.c.l.b16 %v487
      %v492 = vpack.c.b16 %v491, %v490
      %v494 = vsel %vm294, %v492, 0
      %v497 = vsel %vm298, %v489, 0
      %499 = vmatprep.subr.bf16.mxu0 0
      %500 = vmatpush1.bf16.msra.mxu0 %v497
      %501 = vmatprep.subr.bf16.mxu0 0
      %502 = vmatpush1.bf16.msra.mxu0 0
      %503 = vmatprep.subr.bf16.mxu0 0
      %504 = vmatpush1.bf16.msra.mxu0 0
      %505 = vmatprep.subr.bf16.mxu0 0
      %506 = vmatpush1.bf16.msra.mxu0 0
      %507 = vmatprep.subr.bf16.mxu0 0
      %508 = vmatpush1.bf16.msra.mxu0 0
      %509 = vmatprep.subr.bf16.mxu0 0
      %510 = vmatpush1.bf16.msra.mxu0 0
      %511 = vmatprep.subr.bf16.mxu0 0
      %512 = vmatpush1.bf16.msra.mxu0 0
      %513 = vmatprep.subr.bf16.mxu0 0
      %514 = vmatpush1.bf16.msra.mxu0 0
      %515 = vmatprep.subr.bf16.mxu0 0
      %516 = vmatpush1.bf16.msra.mxu0 0
      %517 = vmatprep.subr.bf16.mxu0 0
      %518 = vmatpush1.bf16.msra.mxu0 0
      %519 = vmatprep.subr.bf16.mxu0 0
      %520 = vmatpush1.bf16.msra.mxu0 0
      %521 = vmatprep.subr.bf16.mxu0 0
      %522 = vmatpush1.bf16.msra.mxu0 0
      %523 = vmatprep.subr.bf16.mxu0 0
      %524 = vmatpush1.bf16.msra.mxu0 0
      %525 = vmatprep.subr.bf16.mxu0 0
      %526 = vmatpush1.bf16.msra.mxu0 0
      %527 = vmatprep.subr.bf16.mxu0 0
      %528 = vmatpush1.bf16.msra.mxu0 0
      %529 = vmatprep.subr.bf16.mxu0 0
      %530 = vmatpush1.bf16.msra.mxu0 0
      %531 = vmatprep.mubr.bf16.mxu0 0
      %532 = vmatmul.mubr.bf16.gmra.mrb[0].mxu0 %v494
      %v533 = vpop.f32.mrb[0].mxu0
      %v534 = vadd.f32 0.0, %v533
      %v535 = vpop.f32.mrb[0].mxu0
      %v536 = vpop.f32.mrb[0].mxu0
      %v537 = vadd.f32 0.0, %v536
      %v538 = vpop.f32.mrb[0].mxu0
      %539 = vdwg.mxu0
      %v540 = vadd.f32 %v454, %v534
      %v541 = vadd.f32 %v455, %v537
      %s542 = sadd.s32 %s249, 1
      %s543 = smul.u32 %s542, 4
      %s544 = smul.addr %s543, 4
      %s545 = scalar_lea.vmem %s237, %s544
      %v546 = vld [vmem:[%s545] sm:$0xf]
      %v547 = vld [vmem:[%s545 + $0x10] sm:$0xf]
      %s548 = scalar_lea.vmem %s1, 16
      %v549 = vld [vmem:[%s548] sm:$0xf]
      %v552 = vunpack.c.l.b16 %v546
      %v553 = vunpack.c.l.b16 %v547
      %v554 = vpack.c.b16 %v553, %v552
      %v556 = vsel %vm294, %v554, 0
      %v559 = vsel %vm298, %v549, 0
      %561 = vmatprep.subr.bf16.mxu0 0
      %562 = vmatpush1.bf16.msra.mxu0 %v559
      %563 = vmatprep.subr.bf16.mxu0 0
      %564 = vmatpush1.bf16.msra.mxu0 0
      %565 = vmatprep.subr.bf16.mxu0 0
      %566 = vmatpush1.bf16.msra.mxu0 0
      %567 = vmatprep.subr.bf16.mxu0 0
      %568 = vmatpush1.bf16.msra.mxu0 0
      %569 = vmatprep.subr.bf16.mxu0 0
      %570 = vmatpush1.bf16.msra.mxu0 0
      %571 = vmatprep.subr.bf16.mxu0 0
      %572 = vmatpush1.bf16.msra.mxu0 0
      %573 = vmatprep.subr.bf16.mxu0 0
      %574 = vmatpush1.bf16.msra.mxu0 0
      %575 = vmatprep.subr.bf16.mxu0 0
      %576 = vmatpush1.bf16.msra.mxu0 0
      %577 = vmatprep.subr.bf16.mxu0 0
      %578 = vmatpush1.bf16.msra.mxu0 0
      %579 = vmatprep.subr.bf16.mxu0 0
      %580 = vmatpush1.bf16.msra.mxu0 0
      %581 = vmatprep.subr.bf16.mxu0 0
      %582 = vmatpush1.bf16.msra.mxu0 0
      %583 = vmatprep.subr.bf16.mxu0 0
      %584 = vmatpush1.bf16.msra.mxu0 0
      %585 = vmatprep.subr.bf16.mxu0 0
      %586 = vmatpush1.bf16.msra.mxu0 0
      %587 = vmatprep.subr.bf16.mxu0 0
      %588 = vmatpush1.bf16.msra.mxu0 0
      %589 = vmatprep.subr.bf16.mxu0 0
      %590 = vmatpush1.bf16.msra.mxu0 0
      %591 = vmatprep.subr.bf16.mxu0 0
      %592 = vmatpush1.bf16.msra.mxu0 0
      %593 = vmatprep.mubr.bf16.mxu0 0
      %594 = vmatmul.mubr.bf16.gmra.mrb[0].mxu0 %v556
      %v595 = vpop.f32.mrb[0].mxu0
      %v596 = vadd.f32 0.0, %v595
      %v597 = vpop.f32.mrb[0].mxu0
      %v598 = vpop.f32.mrb[0].mxu0
      %v599 = vadd.f32 0.0, %v598
      %v600 = vpop.f32.mrb[0].mxu0
      %601 = vdwg.mxu0
      %v602 = vadd.f32 %v540, %v596
      %v603 = vadd.f32 %v541, %v599
      %v604 = vld [vmem:[%s545] sm:$0xf]
      %v605 = vld [vmem:[%s545 + $0x4] sm:$0x1]
      %v606 = vld [vmem:[%s545 + $0x10] sm:$0xf]
      %v607 = vld [vmem:[%s545 + $0x14] sm:$0x1]
      %v609 = vshrl.u32 %v604, 16
      %v611 = vrot.slane %v609, 4
      %v612 = vshll.u32 %v604, 16
      %v614 = vrot.slane %v612, 5
      %v615 = vor.u32 %v611, %v614
      %v616 = vrot.slane %v615, 4
      %v618 = vshll.u32 %v605, 16
      %v620 = vrot.slane %v618, 5
      %v621 = vsel %vm260, %v616, %v620
      %v623 = vshrl.u32 %v606, 16
      %v625 = vrot.slane %v623, 4
      %v626 = vshll.u32 %v606, 16
      %v628 = vrot.slane %v626, 5
      %v629 = vor.u32 %v625, %v628
      %v630 = vrot.slane %v629, 4
      %v632 = vshll.u32 %v607, 16
      %v634 = vrot.slane %v632, 5
      %v635 = vsel %vm260, %v630, %v634
      %s636 = scalar_lea.vmem %s1, 20
      %v637 = vld [vmem:[%s636] sm:$0xf]
      %v638 = vunpack.c.l.b16 %v621
      %v639 = vunpack.c.l.b16 %v635
      %v640 = vpack.c.b16 %v639, %v638
      %v642 = vsel %vm294, %v640, 0
      %v645 = vsel %vm298, %v637, 0
      %647 = vmatprep.subr.bf16.mxu0 0
      %648 = vmatpush1.bf16.msra.mxu0 %v645
      %649 = vmatprep.subr.bf16.mxu0 0
      %650 = vmatpush1.bf16.msra.mxu0 0
      %651 = vmatprep.subr.bf16.mxu0 0
      %652 = vmatpush1.bf16.msra.mxu0 0
      %653 = vmatprep.subr.bf16.mxu0 0
      %654 = vmatpush1.bf16.msra.mxu0 0
      %655 = vmatprep.subr.bf16.mxu0 0
      %656 = vmatpush1.bf16.msra.mxu0 0
      %657 = vmatprep.subr.bf16.mxu0 0
      %658 = vmatpush1.bf16.msra.mxu0 0
      %659 = vmatprep.subr.bf16.mxu0 0
      %660 = vmatpush1.bf16.msra.mxu0 0
      %661 = vmatprep.subr.bf16.mxu0 0
      %662 = vmatpush1.bf16.msra.mxu0 0
      %663 = vmatprep.subr.bf16.mxu0 0
      %664 = vmatpush1.bf16.msra.mxu0 0
      %665 = vmatprep.subr.bf16.mxu0 0
      %666 = vmatpush1.bf16.msra.mxu0 0
      %667 = vmatprep.subr.bf16.mxu0 0
      %668 = vmatpush1.bf16.msra.mxu0 0
      %669 = vmatprep.subr.bf16.mxu0 0
      %670 = vmatpush1.bf16.msra.mxu0 0
      %671 = vmatprep.subr.bf16.mxu0 0
      %672 = vmatpush1.bf16.msra.mxu0 0
      %673 = vmatprep.subr.bf16.mxu0 0
      %674 = vmatpush1.bf16.msra.mxu0 0
      %675 = vmatprep.subr.bf16.mxu0 0
      %676 = vmatpush1.bf16.msra.mxu0 0
      %677 = vmatprep.subr.bf16.mxu0 0
      %678 = vmatpush1.bf16.msra.mxu0 0
      %679 = vmatprep.mubr.bf16.mxu0 0
      %680 = vmatmul.mubr.bf16.gmra.mrb[0].mxu0 %v642
      %v681 = vpop.f32.mrb[0].mxu0
      %v682 = vadd.f32 0.0, %v681
      %v683 = vpop.f32.mrb[0].mxu0
      %v684 = vpop.f32.mrb[0].mxu0
      %v685 = vadd.f32 0.0, %v684
      %v686 = vpop.f32.mrb[0].mxu0
      %687 = vdwg.mxu0
      %v688 = vadd.f32 %v602, %v682
      %v689 = vadd.f32 %v603, %v685
      %v690 = vld [vmem:[%s2] sm:$0x1]
      %v692 = vlaneseq
      %v693 = vshrl.u32 %v692, 7
      %v694 = vsub.s32 0, %v693
      %v695 = vrot.slane %v690, %v694
      %v697 = vadd.f32 %v688, %v695
      %v698 = vadd.f32 %v689, %v695
      %v699 = vsel %vm294, %v697, 0.0
      %700 = vadd.xlane.f32.xlu0 %v699
      %v701 = vpop.xlane.xlu0 %700
      %v702 = vsel %vm294, %v698, 0.0
      %703 = vadd.xlane.f32.xlu0 %v702
      %v704 = vpop.xlane.xlu0 %703
      %v705 = vrcp.pop 8.0
      %v706 = vmul.f32 %v701, %v705
      %v707 = vmul.f32 %v704, %v705
      %v708 = vsub.f32 %v697, %v706
      %v709 = vsub.f32 %v698, %v707
      %v710 = vmul.f32 %v708, %v708
      %v711 = vmul.f32 %v709, %v709
      %v712 = vsel %vm294, %v710, 0.0
      %713 = vadd.xlane.f32.xlu0 %v712
      %v714 = vpop.xlane.xlu0 %713
      %v715 = vsel %vm294, %v711, 0.0
      %716 = vadd.xlane.f32.xlu0 %v715
      %v717 = vpop.xlane.xlu0 %716
      %v718 = vmul.f32 %v714, %v705
      %v719 = vmul.f32 %v717, %v705
      %v720 = vadd.f32 %v718, 1e-05
      %v721 = vadd.f32 %v719, 1e-05
      %v722 = vrsqrt.pop %v720
      %v723 = vrsqrt.pop %v721
      %v724 = vmul.f32 %v708, %v722
      %v725 = vmul.f32 %v709, %v723
      %v726 = vld [vmem:[%s3] sm:$0x1]
      %v728 = vlaneseq
      %v729 = vshrl.u32 %v728, 7
      %v730 = vsub.s32 0, %v729
      %v731 = vrot.slane %v726, %v730
      %v733 = vmul.f32 %v724, %v731
      %v734 = vmul.f32 %v725, %v731
      %v735 = vld [vmem:[%s4] sm:$0x1]
      %v737 = vlaneseq
      %v738 = vshrl.u32 %v737, 7
      %v739 = vsub.s32 0, %v738
      %v740 = vrot.slane %v735, %v739
      %v742 = vadd.f32 %v733, %v740
      %v743 = vadd.f32 %v734, %v740
      %744 = vst.msk [vmem:[%s246] sm:$0xff] %vm294, %v742
      %745 = vst.msk [vmem:[%s246 + $0x8] sm:$0xff] %vm294, %v743
      %s746 = smul.u32 2, %s21
      %p747 = scmp.lt.s32.totalorder %s20, 1
      %s748 = scalar_select %p747, %s20, 1
      %p749 = scmp.lt.s32.totalorder %s746, 7
      %s750 = scalar_select %p749, %s746, 7
      %s751 = smul.addr %s748, 8
      %s752 = sadd.s32 %s750, %s751
      %s753 = smul.addr %s752, 8
      %s754 = scalar_lea.vmem %s5, %s753
      // Predicated region
      $region41: #{tpu_custom_call.1} parent=39 // pred_check
        %p755 = pneg %p158
      $region42: #{tpu_custom_call.1} parent=39 // pred_check_branch
        %757 = sbr.rel (%p755) target = $region44
      $region43: #{tpu_custom_call.1} parent=39 // pred_region
        %s758 = smul.u32 2, %s21
      $region44: #{tpu_custom_call.1} parent=39 // pred_fallthru
        _
    $region40: #{tpu_custom_call.1} parent=5 // pred_fallthru
      _
    %p759 = scmp.le.s32.totalorder 2, %s11
    // Predicated region
    $region45: #{tpu_custom_call.1} parent=5 // pred_check
      %p760 = pneg %p759
    $region46: #{tpu_custom_call.1} parent=5 // pred_check_branch
      %762 = sbr.rel (%p760) target = $region48
    $region47: #{tpu_custom_call.1} parent=5 // pred_region
      %s763 = ssub.s32 %s11, 2
      // Predicated region
      $region49: #{tpu_custom_call.1} parent=47 // pred_check
        %p764 = pneg %p164
      $region50: #{tpu_custom_call.1} parent=47 // pred_check_branch
        %766 = sbr.rel (%p764) target = $region52
      $region51: #{tpu_custom_call.1} parent=47 // pred_region
        %s767 = smul.u32 2, %s23
        %p768 = scmp.lt.s32.totalorder %s22, 1
        %s769 = scalar_select %p768, %s22, 1
        %p770 = scmp.lt.s32.totalorder %s767, 7
        %s771 = scalar_select %p770, %s767, 7
        %s772 = smul.addr %s769, 8
        %s773 = sadd.s32 %s771, %s772
        %s774 = smul.addr %s773, 8
        %s775 = scalar_lea.vmem %s5, %s774
      $region52: #{tpu_custom_call.1} parent=47 // pred_fallthru
        _
    $region48: #{tpu_custom_call.1} parent=5 // pred_fallthru
      _
  $region6: #{tpu_custom_call.1} parent=0 // loop_footer
    %s15 = sadd.s32 1, %s11
  $region7: #{tpu_custom_call.1} parent=0 // loop_footer_branch
    %10 = sbr.rel target = $region3
  $region8: #{tpu_custom_call.1} parent=0 // loop_exit
    _

</llo_original>
